<compile_context>
chip_gen: v7x
topology: tpu7x:2x2x1
jax: 0.10.0
libtpu: 0.0.40
codegen_flags: <defaults>
</compile_context>

<pallas_src>
import jax
import jax.numpy as jnp
from jax.experimental import pallas as pl
from jax.experimental.pallas import tpu as pltpu


_LANE = 128        # lane width of a vreg
_MAX_TILE = 512    # lane tile size (large multiple of 128 -> ~85% HBM roofline)


def _round_up(x, m):
    return (x + m - 1) // m * m


def _lane_tiling(length):
    """Return (tile_lanes, padded_length) with tile a multiple of 128."""
    if length <= _MAX_TILE:
        tl = _round_up(length, _LANE)
        return tl, tl
    return _MAX_TILE, _round_up(length, _MAX_TILE)


def _vmem_limit(*tile_bytes):
    # Explicit scoped-VMEM budget: double-buffered tiles + slack, capped well
    # under the v7x 64 MiB per-TensorCore VMEM.
    need = 2 * int(sum(tile_bytes)) + (1 << 20)
    return int(min(max(need, 16 << 20), 48 << 20))


# ----------------------------- Pallas kernels ------------------------------


def _mix_bias_kernel(x_ref, w_ref, b_ref, o_ref):
    # x_ref: (C_in, TL), w_ref: (C_out, C_in), b_ref: (C_out, 1), o_ref: (C_out, TL)
    y = jnp.dot(w_ref[...], x_ref[...], preferred_element_type=jnp.float32)
    o_ref[...] = (y + b_ref[...]).astype(o_ref.dtype)


def _mix2_kernel(xa_ref, xb_ref, wa_ref, wb_ref, o_ref):
    # Fused "concat + 1x1 conv": o = wa @ xa + wb @ xb  (bias=False)
    y = jnp.dot(wa_ref[...], xa_ref[...], preferred_element_type=jnp.float32)
    y = y + jnp.dot(wb_ref[...], xb_ref[...], preferred_element_type=jnp.float32)
    o_ref[...] = y.astype(o_ref.dtype)


# ------------------------------ pallas_call wrappers ------------------------


def _channel_mix_bias(x2d, w, b):
    """(C_out, L) = w @ x2d + b[:, None], tiled over the lane (L) axis."""
    c_in, length = x2d.shape
    c_out = w.shape[0]
    tl, lp = _lane_tiling(length)
    if lp != length:
        x2d = jnp.pad(x2d, ((0, 0), (0, lp - length)))
    b2d = b.reshape(c_out, 1).astype(jnp.float32)

    out = pl.pallas_call(
        _mix_bias_kernel,
        out_shape=jax.ShapeDtypeStruct((c_out, lp), x2d.dtype),
        grid_spec=pltpu.PrefetchScalarGridSpec(
            num_scalar_prefetch=0,
            grid=(lp // tl,),
            in_specs=[
                pl.BlockSpec((c_in, tl), lambda l: (0, l)),
                pl.BlockSpec((c_out, c_in), lambda l: (0, 0)),   # resident weight
                pl.BlockSpec((c_out, 1), lambda l: (0, 0)),      # resident bias
            ],
            out_specs=pl.BlockSpec((c_out, tl), lambda l: (0, l)),
        ),
        compiler_params=pltpu.CompilerParams(
            dimension_semantics=("parallel",),
            vmem_limit_bytes=_vmem_limit(4 * c_in * tl, 4 * c_out * tl,
                                         4 * c_out * c_in, 4 * c_out),
        ),
    )(x2d, w, b2d)
    return out[:, :length]


def _channel_mix2(xa2d, xb2d, wa, wb, out_dtype):
    """(C_out, L) = wa @ xa2d + wb @ xb2d (fused concat + 1x1 conv, no bias)."""
    ca, length = xa2d.shape
    cb = xb2d.shape[0]
    c_out = wa.shape[0]
    tl, lp = _lane_tiling(length)
    if lp != length:
        pad = ((0, 0), (0, lp - length))
        xa2d = jnp.pad(xa2d, pad)
        xb2d = jnp.pad(xb2d, pad)

    out = pl.pallas_call(
        _mix2_kernel,
        out_shape=jax.ShapeDtypeStruct((c_out, lp), out_dtype),
        grid_spec=pltpu.PrefetchScalarGridSpec(
            num_scalar_prefetch=0,
            grid=(lp // tl,),
            in_specs=[
                pl.BlockSpec((ca, tl), lambda l: (0, l)),
                pl.BlockSpec((cb, tl), lambda l: (0, l)),
                pl.BlockSpec((c_out, ca), lambda l: (0, 0)),     # resident weight
                pl.BlockSpec((c_out, cb), lambda l: (0, 0)),     # resident weight
            ],
            out_specs=pl.BlockSpec((c_out, tl), lambda l: (0, l)),
        ),
        compiler_params=pltpu.CompilerParams(
            dimension_semantics=("parallel",),
            vmem_limit_bytes=_vmem_limit(4 * ca * tl, 4 * cb * tl,
                                         4 * c_out * tl,
                                         4 * c_out * (ca + cb)),
        ),
    )(xa2d, xb2d, wa, wb)
    return out[:, :length]


# ------------------------------ Up2Lin forward ------------------------------


def up2lin_forward(x1, x2, up_weight, up_bias, conv_weight):
    """Up2Lin (bilinear=False) forward.

    x1: (N, C1, H1, W1)                x2: (N, C2, H2, W2)
    up_weight: (C1, C2, 2, 2)  (ConvTranspose2d weight), up_bias: (C2,)
    conv_weight: (C_out, 2*C2, 1, 1)   (1x1 Conv2d, bias=False)
    Returns (N, C_out, H2, W2).
    """
    n, c1, h1, w1 = x1.shape
    _, c2, h2, w2 = x2.shape
    c_out = conv_weight.shape[0]

    # ---- ConvTranspose2d(k=2, s=2): one lane-dense pointwise matmul ----
    # out[n, o, 2i+di, 2j+dj] = sum_c W[c, o, di, dj] * x1[n, c, i, j] + b[o]
    x1_flat = jnp.transpose(x1, (1, 0, 2, 3)).reshape(c1, n * h1 * w1)
    w_up = jnp.transpose(up_weight, (2, 3, 1, 0)).reshape(4 * c2, c1)  # rows=(di,dj,o)
    b_up = jnp.tile(up_bias, 4)                                        # bias[o] per row

    up_flat = _channel_mix_bias(x1_flat, w_up, b_up)                   # (4*C2, N*H1*W1)

    # Scatter the four (di, dj) quadrants back to (N, C2, 2*H1, 2*W1).
    up_nchw = up_flat.reshape(2, 2, c2, n, h1, w1)
    up_nchw = jnp.transpose(up_nchw, (3, 2, 4, 0, 5, 1))               # (n,c2,h1,di,w1,dj)
    up_nchw = up_nchw.reshape(n, c2, 2 * h1, 2 * w1)

    # ---- F.pad to x2's spatial size ----
    diff_y = h2 - 2 * h1
    diff_x = w2 - 2 * w1
    up_pad = jnp.pad(up_nchw, ((0, 0), (0, 0),
                               (diff_y // 2, diff_y - diff_y // 2),
                               (diff_x // 2, diff_x - diff_x // 2)))

    # ---- cat([x2, up_pad], dim=1) + 1x1 conv, fused by splitting the weight ----
    wc = conv_weight.reshape(c_out, 2 * c2)
    wc_a, wc_b = wc[:, :c2], wc[:, c2:]
    x2_flat = jnp.transpose(x2, (1, 0, 2, 3)).reshape(c2, n * h2 * w2)
    up_flat2 = jnp.transpose(up_pad, (1, 0, 2, 3)).reshape(c2, n * h2 * w2)

    out_flat = _channel_mix2(x2_flat, up_flat2, wc_a, wc_b, x2.dtype)  # (C_out, N*H2*W2)
    return out_flat.reshape(c_out, n, h2, w2).transpose(1, 0, 2, 3)


# ------------------------------ pure-JAX reference ---------------------------


def up2lin_ref(x1, x2, up_weight, up_bias, conv_weight):
    n, c1, h1, w1 = x1.shape
    _, c2, h2, w2 = x2.shape
    hi = jax.lax.Precision.HIGHEST
    t = jnp.einsum("nchw,coij->nohiwj", x1, up_weight, precision=hi)
    up = t.reshape(n, c2, 2 * h1, 2 * w1) + up_bias[None, :, None, None]
    dy, dx = h2 - 2 * h1, w2 - 2 * w1
    up = jnp.pad(up, ((0, 0), (0, 0),
                      (dy // 2, dy - dy // 2), (dx // 2, dx - dx // 2)))
    cat = jnp.concatenate([x2, up], axis=1)
    wc = conv_weight.reshape(conv_weight.shape[0], 2 * c2)
    return jnp.einsum("oc,nchw->nohw", wc, cat, precision=hi)


if __name__ == "__main__":
    key = jax.random.PRNGKey(0)
    ks = jax.random.split(key, 5)

    n, c1, c2, c_out = 2, 8, 4, 6
    h1, w1 = 8, 8
    h2, w2 = 16, 16

    x1 = jax.random.normal(ks[0], (n, c1, h1, w1), dtype=jnp.float32)
    x2 = jax.random.normal(ks[1], (n, c2, h2, w2), dtype=jnp.float32)
    up_w = jax.random.normal(ks[2], (c1, c2, 2, 2), dtype=jnp.float32) * 0.1
    up_b = jax.random.normal(ks[3], (c2,), dtype=jnp.float32) * 0.1
    conv_w = jax.random.normal(ks[4], (c_out, 2 * c2, 1, 1), dtype=jnp.float32) * 0.1

    out = jax.block_until_ready(up2lin_forward(x1, x2, up_w, up_b, conv_w))
    ref = up2lin_ref(x1, x2, up_w, up_b, conv_w)
    assert out.shape == (n, c_out, h2, w2)
    assert jnp.allclose(out, ref, atol=1e-4, rtol=1e-4)

    # Second case: odd spatial sizes exercise F.pad and the lane-padding path.
    x1b = jax.random.normal(ks[0], (1, c1, 6, 5), dtype=jnp.float32)
    x2b = jax.random.normal(ks[1], (1, c2, 13, 11), dtype=jnp.float32)
    out_b = jax.block_until_ready(up2lin_forward(x1b, x2b, up_w, up_b, conv_w))
    ref_b = up2lin_ref(x1b, x2b, up_w, up_b, conv_w)
    assert out_b.shape == (1, c_out, 13, 11)
    assert jnp.allclose(out_b, ref_b, atol=1e-4, rtol=1e-4)

    print("KERNEL_OK")
</pallas_src>

<mosaic_0001>
module attributes {stable_mosaic.version = 11 : i64} {
  func.func @_mix_bias_kernel(%arg0: i32, %arg1: memref<8x128xf32, #tpu.memory_space<vmem>>, %arg2: memref<16x8xf32, #tpu.memory_space<vmem>>, %arg3: memref<16x1xf32, #tpu.memory_space<vmem>>, %arg4: memref<16x128xf32, #tpu.memory_space<vmem>>) attributes {dimension_semantics = [#tpu.dimension_semantics<parallel>], iteration_bounds = array<i64: 1>, scalar_prefetch = 0 : i64, scratch_operands = 0 : i64, tpu.core_type = #tpu.core_type<tc>, window_params = [{transform_indices = @transform_0, window_bounds = array<i64: 8, 128>}, {pipeline_mode = #tpu.pipeline_mode<synchronous>, transform_indices = @transform_1, window_bounds = array<i64: 16, 8>}, {pipeline_mode = #tpu.pipeline_mode<synchronous>, transform_indices = @transform_2, window_bounds = array<i64: 16, 1>}, {transform_indices = @transform_3, window_bounds = array<i64: 16, 128>}]} {
    %c0 = arith.constant 0 : index
    %c0_0 = arith.constant 0 : index
    %0 = vector.load %arg2[%c0, %c0_0] : memref<16x8xf32, #tpu.memory_space<vmem>>, vector<16x8xf32>
    %c0_1 = arith.constant 0 : index
    %c0_2 = arith.constant 0 : index
    %1 = vector.load %arg1[%c0_1, %c0_2] : memref<8x128xf32, #tpu.memory_space<vmem>>, vector<8x128xf32>
    %cst = arith.constant dense<0.000000e+00> : vector<16x128xf32>
    %2 = tpu.matmul %0, %1, %cst {dimension_numbers = #tpu.dot_dimension_numbers<[1], [0], [0], [1], [0, 0, 1, 1], [], []>} : vector<16x8xf32>, vector<8x128xf32>, vector<16x128xf32> -> vector<16x128xf32>
    %c0_3 = arith.constant 0 : index
    %c0_4 = arith.constant 0 : index
    %3 = vector.load %arg3[%c0_3, %c0_4] : memref<16x1xf32, #tpu.memory_space<vmem>>, vector<16x1xf32>
    %4 = vector.broadcast %3 : vector<16x1xf32> to vector<16x128xf32>
    %5 = arith.addf %2, %4 : vector<16x128xf32>
    %c0_5 = arith.constant 0 : index
    %c0_6 = arith.constant 0 : index
    %6 = vector.load %arg4[%c0_5, %c0_6] : memref<16x128xf32, #tpu.memory_space<vmem>>, vector<16x128xf32>
    tpu.vector_store %arg4[%c0_5, %c0_6], %5 {strides = array<i32>} : memref<16x128xf32, #tpu.memory_space<vmem>>, vector<16x128xf32>,
    return
  }
  func.func @transform_0(%arg0: i32) -> (i32, i32) {
    %c0_i32 = arith.constant 0 : i32
    %c0_i32_0 = arith.constant 0 : i32
    return %c0_i32, %arg0 : i32, i32
  }
  func.func @transform_1(%arg0: i32) -> (i32, i32) {
    %c0_i32 = arith.constant 0 : i32
    %c0_i32_0 = arith.constant 0 : i32
    %c0_i32_1 = arith.constant 0 : i32
    return %c0_i32, %c0_i32_0 : i32, i32
  }
  func.func @transform_2(%arg0: i32) -> (i32, i32) {
    %c0_i32 = arith.constant 0 : i32
    %c0_i32_0 = arith.constant 0 : i32
    %c0_i32_1 = arith.constant 0 : i32
    return %c0_i32, %c0_i32_0 : i32, i32
  }
  func.func @transform_3(%arg0: i32) -> (i32, i32) {
    %c0_i32 = arith.constant 0 : i32
    %c0_i32_0 = arith.constant 0 : i32
    return %c0_i32, %arg0 : i32, i32
  }
}

</mosaic_0001>

<llo_original>
// kernel: tpu_custom_call.1
$region0: #{tpu_custom_call.1}
  #allocation0 [shape = 'u32[]', space=smem, size = 0x4, offset = 0x4, fixed_abs, tag = 'smem constant byte address 0x4 - core index']
  #allocation1 [shape = 'u32[144,128]{1,0:T(1,128)}', space=vmem, size = 0x12000, scoped, tag = 'internal scratch']
  %s0 = inlined_call_operand.vmem [shape: f32[8,128], index: 0, kind: input, shape index: {}]
  %s1 = inlined_call_operand.vmem [shape: f32[16,8], index: 1, kind: input, shape index: {}]
  %s2 = inlined_call_operand.vmem [shape: f32[16,1], index: 2, kind: input, shape index: {}]
  %s3 = inlined_call_operand.hbm [shape: f32[16,128], index: 3, kind: output, shape index: {}]
  %s4 = sld [smem:[#allocation0]]
  $region22: #{tpu_custom_call.1} parent=0
    _
  %s6 = ssub.s32 1, %s4
  %s7 = scalar_select 0, %s6, %s4
  $region1: #{tpu_custom_call.1} parent=0
    #allocation2 [shape = 'u8[8192]{0}', space=vmem, size = 0x2000, scoped, tag = 'output window, operand 0, single buffered']
    #allocation3 [shape = 's32[1]{0}', space=sflag, size = 0x4, scoped, tag = 'scoped memory for tpu_custom_call.1']
    %8 = vsyncpa [#allocation3], 0
    // Predicated region
    $region2: #{tpu_custom_call.1} parent=1 // pred_check
      _
    $region3: #{tpu_custom_call.1} parent=1 // pred_check_branch
      %10 = sbr.rel (0) target = $region5
    $region4: #{tpu_custom_call.1} parent=1 // pred_region
      _
    $region5: #{tpu_custom_call.1} parent=1 // pred_fallthru
      _
    // Predicated region
    $region6: #{tpu_custom_call.1} parent=1 // pred_check
      _
    $region7: #{tpu_custom_call.1} parent=1 // pred_check_branch
      %12 = sbr.rel (0) target = $region9
    $region8: #{tpu_custom_call.1} parent=1 // pred_region
      _
    $region9: #{tpu_custom_call.1} parent=1 // pred_fallthru
      _
    // Predicated region
    $region10: #{tpu_custom_call.1} parent=1 // pred_check
      _
    $region11: #{tpu_custom_call.1} parent=1 // pred_check_branch
      %14 = sbr.rel (0) target = $region13
    $region12: #{tpu_custom_call.1} parent=1 // pred_region
      _
    $region13: #{tpu_custom_call.1} parent=1 // pred_fallthru
      _
    %v15 = vld [vmem:[%s1] sm:$0xff]
    %v16 = vld [vmem:[%s1 + $0x8] sm:$0xff]
    %v17 = vld [vmem:[%s0] sm:$0xff]
    %v18 = vld [vmem:[%s2] sm:$0xff]
    %v19 = vld [vmem:[%s2 + $0x8] sm:$0xff]
    %21 = vset.pattern.permute.xlu0 0
    %22 = vperm.xlu0 %21, %v18
    %v23 = vpop.permute.xlu0 %22
    %26 = vset.pattern.permute.xlu0 0
    %27 = vperm.xlu0 %26, %v19
    %v28 = vpop.permute.xlu0 %27
    %vm30 = vcmask 64512
    %v32 = vsel %vm30, %v15, 0
    %v35 = vsel %vm30, %v16, 0
    %37 = vmatprep.subr.mxu0 0.0
    %38 = vmatpush1.msra.mxu0 %v17
    %39 = vmatprep.subr.mxu0 0.0
    %40 = vmatpush1.msra.mxu0 0.0
    %41 = vmatprep.subr.mxu0 0.0
    %42 = vmatpush1.msra.mxu0 0.0
    %43 = vmatprep.subr.mxu0 0.0
    %44 = vmatpush1.msra.mxu0 0.0
    %45 = vmatprep.subr.mxu0 0.0
    %46 = vmatpush1.msra.mxu0 0.0
    %47 = vmatprep.subr.mxu0 0.0
    %48 = vmatpush1.msra.mxu0 0.0
    %49 = vmatprep.subr.mxu0 0.0
    %50 = vmatpush1.msra.mxu0 0.0
    %51 = vmatprep.subr.mxu0 0.0
    %52 = vmatpush1.msra.mxu0 0.0
    %53 = vmatprep.subr.mxu0 0.0
    %54 = vmatpush1.msra.mxu0 0.0
    %55 = vmatprep.subr.mxu0 0.0
    %56 = vmatpush1.msra.mxu0 0.0
    %57 = vmatprep.subr.mxu0 0.0
    %58 = vmatpush1.msra.mxu0 0.0
    %59 = vmatprep.subr.mxu0 0.0
    %60 = vmatpush1.msra.mxu0 0.0
    %61 = vmatprep.subr.mxu0 0.0
    %62 = vmatpush1.msra.mxu0 0.0
    %63 = vmatprep.subr.mxu0 0.0
    %64 = vmatpush1.msra.mxu0 0.0
    %65 = vmatprep.subr.mxu0 0.0
    %66 = vmatpush1.msra.mxu0 0.0
    %67 = vmatprep.subr.mxu0 0.0
    %68 = vmatpush1.msra.mxu0 0.0
    %69 = vmatprep.subr.mxu0 0.0
    %70 = vmatpush1.msra.mxu0 0.0
    %71 = vmatprep.subr.mxu0 0.0
    %72 = vmatpush1.msra.mxu0 0.0
    %73 = vmatprep.subr.mxu0 0.0
    %74 = vmatpush1.msra.mxu0 0.0
    %75 = vmatprep.subr.mxu0 0.0
    %76 = vmatpush1.msra.mxu0 0.0
    %77 = vmatprep.subr.mxu0 0.0
    %78 = vmatpush1.msra.mxu0 0.0
    %79 = vmatprep.subr.mxu0 0.0
    %80 = vmatpush1.msra.mxu0 0.0
    %81 = vmatprep.subr.mxu0 0.0
    %82 = vmatpush1.msra.mxu0 0.0
    %83 = vmatprep.subr.mxu0 0.0
    %84 = vmatpush1.msra.mxu0 0.0
    %85 = vmatprep.subr.mxu0 0.0
    %86 = vmatpush1.msra.mxu0 0.0
    %87 = vmatprep.subr.mxu0 0.0
    %88 = vmatpush1.msra.mxu0 0.0
    %89 = vmatprep.subr.mxu0 0.0
    %90 = vmatpush1.msra.mxu0 0.0
    %91 = vmatprep.subr.mxu0 0.0
    %92 = vmatpush1.msra.mxu0 0.0
    %93 = vmatprep.subr.mxu0 0.0
    %94 = vmatpush1.msra.mxu0 0.0
    %95 = vmatprep.subr.mxu0 0.0
    %96 = vmatpush1.msra.mxu0 0.0
    %97 = vmatprep.subr.mxu0 0.0
    %98 = vmatpush1.msra.mxu0 0.0
    %99 = vmatprep.subr.mxu0 0.0
    %100 = vmatpush1.msra.mxu0 0.0
    %101 = vmatprep.mubr.f32.mxu0 0.0
    %102 = vmatmul.mubr.f32.gmra.mrb[0].mxu0 %v32
    %v103 = vpop.f32.mrb[0].mxu0
    %v104 = vadd.f32 %v23, %v103
    %v105 = vpop.f32.mrb[0].mxu0
    %106 = vmatprep.mubr.f32.mxu0 0.0
    %107 = vmatmul.mubr.f32.gmra.mrb[0].mxu0 %v35
    %v108 = vpop.f32.mrb[0].mxu0
    %v109 = vadd.f32 %v28, %v108
    %v110 = vpop.f32.mrb[0].mxu0
    %111 = vdwg.mxu0
    %112 = vst [vmem:[#allocation2] sm:$0xff] %v104
    %113 = vst [vmem:[#allocation2 + $0x8] sm:$0xff] %v109
    // Predicated region
    $region14: #{tpu_custom_call.1} parent=1 // pred_check
      _
    $region15: #{tpu_custom_call.1} parent=1 // pred_check_branch
      %115 = sbr.rel (0) target = $region17
    $region16: #{tpu_custom_call.1} parent=1 // pred_region
      %s117 = ssub.s32 256, 256
      %118 = vsyncadd [#allocation3], %s117
      %s119 = sshll.u32 [#allocation2], 4
      %s120 = int_to_ptr.vmem [resolvable:$true] %s119
      %125 = dma.vmem_to_hbm [thread:$0]  %s120, 256, %s3, [#allocation3], 128, 128, 8
    $region17: #{tpu_custom_call.1} parent=1 // pred_fallthru
      _
    // Predicated region
    $region18: #{tpu_custom_call.1} parent=1 // pred_check
      _
    $region19: #{tpu_custom_call.1} parent=1 // pred_check_branch
      %127 = sbr.rel (0) target = $region21
    $region20: #{tpu_custom_call.1} parent=1 // pred_region
      %128 = dma.done [#allocation3], 256
    $region21: #{tpu_custom_call.1} parent=1 // pred_fallthru
      _
    %129 = vsyncpa [#allocation3], 1

</llo_original>
